<compile_context>
chip_gen: v5e
topology: v5e:2x2
jax: 0.10.0
libtpu: 0.0.40
codegen_flags: <defaults>
</compile_context>

<pallas_src>
import functools

import jax
import jax.numpy as jnp
from jax.experimental import pallas as pl
from jax.experimental.pallas import tpu as pltpu

LANE = 128  # TPU vreg lane width


def _round_up(n: int, m: int) -> int:
    return ((n + m - 1) // m) * m


def simple_nn_kernel(x_ref, w1_ref, b1_ref, w2_ref, b2_ref, o_ref):
    # layer1: x @ W1 + b1, ReLU  (f32 accumulation on the MXU)
    h = jnp.dot(x_ref[...], w1_ref[...], preferred_element_type=jnp.float32)
    h = jnp.maximum(h + b1_ref[...], 0.0)
    # layer2: h @ W2 + b2, sigmoid * 4 + 1 (epilogue on VPU/EUP, free slots)
    y = jnp.dot(h.astype(w2_ref.dtype), w2_ref[...],
                preferred_element_type=jnp.float32)
    y = jax.nn.sigmoid(y + b2_ref[...]) * 4.0 + 1.0
    o_ref[...] = y.astype(o_ref.dtype)


@functools.partial(jax.jit, static_argnames=("batch_tile",))
def simple_nn_forward(x, w1, b1, w2, b2, *, batch_tile=256):
    """Forward pass. x: (B, I); w1: (I, H); b1: (1, H); w2: (H, O); b2: (1, O)."""
    B, I = x.shape
    H = w1.shape[1]
    O = w2.shape[1]

    # Zero-pad hidden/output lane dims to 128 for lane-dense MXU operands and
    # unmasked output stores.
    Hp = max(_round_up(H, LANE), LANE)
    Op = max(_round_up(O, LANE), LANE)
    w1p = jnp.zeros((I, Hp), w1.dtype).at[:, :H].set(w1)
    b1p = jnp.zeros((1, Hp), b1.dtype).at[:, :H].set(b1.reshape(1, H))
    w2p = jnp.zeros((Hp, Op), w2.dtype).at[:H, :O].set(w2)
    b2p = jnp.zeros((1, Op), b2.dtype).at[:, :O].set(b2.reshape(1, O))

    if B <= batch_tile:
        # Small batch: single whole-array VMEM block, no grid / pipeline.
        out = pl.pallas_call(
            simple_nn_kernel,
            out_shape=jax.ShapeDtypeStruct((B, Op), jnp.float32),
            in_specs=[pl.BlockSpec(memory_space=pltpu.MemorySpace.VMEM)] * 5,
            out_specs=pl.BlockSpec(memory_space=pltpu.MemorySpace.VMEM),
        )(x, w1p, b1p, w2p, b2p)
        return out[:, :O]

    # Large batch: tile over batch, keep weights resident in VMEM across the
    # grid, let BlockSpec double-buffer the x / out tiles.
    Bp = _round_up(B, batch_tile)
    xp = x if Bp == B else jnp.zeros((Bp, I), x.dtype).at[:B].set(x)
    out = pl.pallas_call(
        simple_nn_kernel,
        out_shape=jax.ShapeDtypeStruct((Bp, Op), jnp.float32),
        grid=(Bp // batch_tile,),
        in_specs=[
            pl.BlockSpec((batch_tile, I), lambda i: (i, 0)),
            pl.BlockSpec((I, Hp), lambda i: (0, 0)),   # weights resident
            pl.BlockSpec((1, Hp), lambda i: (0, 0)),
            pl.BlockSpec((Hp, Op), lambda i: (0, 0)),
            pl.BlockSpec((1, Op), lambda i: (0, 0)),
        ],
        out_specs=pl.BlockSpec((batch_tile, Op), lambda i: (i, 0)),
        compiler_params=pltpu.CompilerParams(
            # "parallel" lets v7x shard the batch axis over its 2 TensorCores;
            # neutral on single-TC v5e/v6e.
            dimension_semantics=("parallel",)),
    )(xp, w1p, b1p, w2p, b2p)
    return out[:B, :O]


def init_params(key, input_size, hidden_size, output_size):
    # Deterministic init mimicking nn.Linear's uniform(-1/sqrt(fan_in), ...).
    k1, k2, k3, k4 = jax.random.split(key, 4)
    lim1 = 1.0 / jnp.sqrt(input_size)
    lim2 = 1.0 / jnp.sqrt(hidden_size)
    w1 = jax.random.uniform(k1, (input_size, hidden_size), jnp.float32, -lim1, lim1)
    b1 = jax.random.uniform(k2, (1, hidden_size), jnp.float32, -lim1, lim1)
    w2 = jax.random.uniform(k3, (hidden_size, output_size), jnp.float32, -lim2, lim2)
    b2 = jax.random.uniform(k4, (1, output_size), jnp.float32, -lim2, lim2)
    return w1, b1, w2, b2


def _reference(x, w1, b1, w2, b2):
    h = jnp.maximum(x @ w1 + b1, 0.0)
    return jax.nn.sigmoid(h @ w2 + b2) * 4.0 + 1.0


if __name__ == "__main__":
    input_size, hidden_size, output_size = 16, 32, 8

    key = jax.random.PRNGKey(0)
    kx, kp, kx2 = jax.random.split(key, 3)
    w1, b1, w2, b2 = init_params(kp, input_size, hidden_size, output_size)

    # Small batch -> single-block (no grid) path.
    x_small = jax.random.normal(kx, (8, input_size), jnp.float32)
    out_small = jax.block_until_ready(simple_nn_forward(x_small, w1, b1, w2, b2))
    ref_small = _reference(x_small, w1, b1, w2, b2)
    assert out_small.shape == (8, output_size)
    assert jnp.allclose(out_small, ref_small, atol=1e-5), "small-batch mismatch"

    # Larger (non-multiple) batch -> batch-tiled path with resident weights.
    x_big = jax.random.normal(kx2, (300, input_size), jnp.float32)
    out_big = jax.block_until_ready(
        simple_nn_forward(x_big, w1, b1, w2, b2, batch_tile=256))
    ref_big = _reference(x_big, w1, b1, w2, b2)
    assert out_big.shape == (300, output_size)
    assert jnp.allclose(out_big, ref_big, atol=1e-5), "tiled-batch mismatch"

    print("KERNEL_OK")
</pallas_src>

<mosaic_0001>
module attributes {stable_mosaic.version = 11 : i64} {
  func.func @simple_nn_kernel(%arg0: memref<8x16xf32, #tpu.memory_space<vmem>>, %arg1: memref<16x128xf32, #tpu.memory_space<vmem>>, %arg2: memref<1x128xf32, #tpu.memory_space<vmem>>, %arg3: memref<128x128xf32, #tpu.memory_space<vmem>>, %arg4: memref<1x128xf32, #tpu.memory_space<vmem>>, %arg5: memref<8x128xf32, #tpu.memory_space<vmem>>) attributes {dimension_semantics = [], scalar_prefetch = 0 : i64, scratch_operands = 0 : i64, tpu.core_type = #tpu.core_type<tc>} {
    %c0 = arith.constant 0 : index
    %c0_0 = arith.constant 0 : index
    %0 = vector.load %arg0[%c0, %c0_0] : memref<8x16xf32, #tpu.memory_space<vmem>>, vector<8x16xf32>
    %c0_1 = arith.constant 0 : index
    %c0_2 = arith.constant 0 : index
    %1 = vector.load %arg1[%c0_1, %c0_2] : memref<16x128xf32, #tpu.memory_space<vmem>>, vector<16x128xf32>
    %cst = arith.constant dense<0.000000e+00> : vector<8x128xf32>
    %2 = tpu.matmul %0, %1, %cst {dimension_numbers = #tpu.dot_dimension_numbers<[1], [0], [0], [1], [0, 0, 1, 1], [], []>} : vector<8x16xf32>, vector<16x128xf32>, vector<8x128xf32> -> vector<8x128xf32>
    %c0_3 = arith.constant 0 : index
    %c0_4 = arith.constant 0 : index
    %3 = vector.load %arg2[%c0_3, %c0_4] : memref<1x128xf32, #tpu.memory_space<vmem>>, vector<1x128xf32>
    %4 = vector.broadcast %3 : vector<1x128xf32> to vector<8x128xf32>
    %5 = arith.addf %2, %4 : vector<8x128xf32>
    %cst_5 = arith.constant 0.000000e+00 : f32
    %6 = vector.broadcast %cst_5 : f32 to vector<8x128xf32>
    %7 = arith.maximumf %5, %6 : vector<8x128xf32>
    %c0_6 = arith.constant 0 : index
    %c0_7 = arith.constant 0 : index
    %8 = vector.load %arg3[%c0_6, %c0_7] : memref<128x128xf32, #tpu.memory_space<vmem>>, vector<128x128xf32>
    %cst_8 = arith.constant dense<0.000000e+00> : vector<8x128xf32>
    %9 = tpu.matmul %7, %8, %cst_8 {dimension_numbers = #tpu.dot_dimension_numbers<[1], [0], [0], [1], [0, 0, 1, 1], [], []>} : vector<8x128xf32>, vector<128x128xf32>, vector<8x128xf32> -> vector<8x128xf32>
    %c0_9 = arith.constant 0 : index
    %c0_10 = arith.constant 0 : index
    %10 = vector.load %arg4[%c0_9, %c0_10] : memref<1x128xf32, #tpu.memory_space<vmem>>, vector<1x128xf32>
    %11 = vector.broadcast %10 : vector<1x128xf32> to vector<8x128xf32>
    %12 = arith.addf %9, %11 : vector<8x128xf32>
    %13 = arith.negf %12 : vector<8x128xf32>
    %14 = math.exp %13 : vector<8x128xf32>
    %cst_11 = arith.constant 1.000000e+00 : f32
    %15 = vector.broadcast %cst_11 : f32 to vector<8x128xf32>
    %16 = arith.addf %15, %14 : vector<8x128xf32>
    %17 = arith.divf %15, %16 : vector<8x128xf32>
    %cst_12 = arith.constant 4.000000e+00 : f32
    %18 = vector.broadcast %cst_12 : f32 to vector<8x128xf32>
    %19 = arith.mulf %17, %18 : vector<8x128xf32>
    %cst_13 = arith.constant 1.000000e+00 : f32
    %20 = vector.broadcast %cst_13 : f32 to vector<8x128xf32>
    %21 = arith.addf %19, %20 : vector<8x128xf32>
    %c0_14 = arith.constant 0 : index
    %c0_15 = arith.constant 0 : index
    %22 = vector.load %arg5[%c0_14, %c0_15] : memref<8x128xf32, #tpu.memory_space<vmem>>, vector<8x128xf32>
    tpu.vector_store %arg5[%c0_14, %c0_15], %21 {strides = array<i32>} : memref<8x128xf32, #tpu.memory_space<vmem>>, vector<8x128xf32>,
    return
  }
}

</mosaic_0001>

<llo_original>
// kernel: simple_nn_forward.1
$region0: #{simple_nn_forward.1}
  #allocation0 [shape = 'u32[]', space=smem, size = 0x4, offset = 0x4, fixed_abs, tag = 'smem constant byte address 0x4 - core index']
  #allocation1 [shape = 'u32[72,128]{1,0:T(1,128)}', space=vmem, size = 0x9000, scoped, tag = 'internal scratch']
  %s0 = inlined_call_operand.vmem [shape: f32[8,16], index: 0, kind: input, shape index: {}]
  %s1 = inlined_call_operand.vmem [shape: f32[16,128], index: 1, kind: input, shape index: {}]
  %s2 = inlined_call_operand.vmem [shape: f32[1,128], index: 2, kind: input, shape index: {}]
  %s3 = inlined_call_operand.vmem [shape: f32[128,128], index: 3, kind: input, shape index: {}]
  %s4 = inlined_call_operand.vmem [shape: f32[1,128], index: 4, kind: input, shape index: {}]
  %s5 = inlined_call_operand.hbm [shape: f32[8,128], index: 5, kind: output, shape index: {}]
  %s6 = sld [smem:[#allocation0]]
  $region30: #{simple_nn_forward.1} parent=0
    _
  %s8 = ssub.s32 1, %s6
  %s9 = scalar_select 0, %s8, %s6
  $region1: #{simple_nn_forward.1} parent=0
    #allocation2 [shape = 'u8[4096]{0}', space=vmem, size = 0x1000, scoped, tag = 'output window, operand 0, single buffered']
    #allocation3 [shape = 's32[1]{0}', space=sflag, size = 0x4, scoped, tag = 'scoped memory for simple_nn_forward.1']
    %10 = vsyncpa [#allocation3], 0
    // Predicated region
    $region2: #{simple_nn_forward.1} parent=1 // pred_check
      _
    $region3: #{simple_nn_forward.1} parent=1 // pred_check_branch
      %12 = sbr.rel (0) target = $region5
    $region4: #{simple_nn_forward.1} parent=1 // pred_region
      _
    $region5: #{simple_nn_forward.1} parent=1 // pred_fallthru
      _
    // Predicated region
    $region6: #{simple_nn_forward.1} parent=1 // pred_check
      _
    $region7: #{simple_nn_forward.1} parent=1 // pred_check_branch
      %14 = sbr.rel (0) target = $region9
    $region8: #{simple_nn_forward.1} parent=1 // pred_region
      _
    $region9: #{simple_nn_forward.1} parent=1 // pred_fallthru
      _
    // Predicated region
    $region10: #{simple_nn_forward.1} parent=1 // pred_check
      _
    $region11: #{simple_nn_forward.1} parent=1 // pred_check_branch
      %16 = sbr.rel (0) target = $region13
    $region12: #{simple_nn_forward.1} parent=1 // pred_region
      _
    $region13: #{simple_nn_forward.1} parent=1 // pred_fallthru
      _
    // Predicated region
    $region14: #{simple_nn_forward.1} parent=1 // pred_check
      _
    $region15: #{simple_nn_forward.1} parent=1 // pred_check_branch
      %18 = sbr.rel (0) target = $region17
    $region16: #{simple_nn_forward.1} parent=1 // pred_region
      _
    $region17: #{simple_nn_forward.1} parent=1 // pred_fallthru
      _
    // Predicated region
    $region18: #{simple_nn_forward.1} parent=1 // pred_check
      _
    $region19: #{simple_nn_forward.1} parent=1 // pred_check_branch
      %20 = sbr.rel (0) target = $region21
    $region20: #{simple_nn_forward.1} parent=1 // pred_region
      _
    $region21: #{simple_nn_forward.1} parent=1 // pred_fallthru
      _
    %v21 = vld [vmem:[%s0] sm:$0xff]
    %v22 = vld [vmem:[%s1] sm:$0xff]
    %v23 = vld [vmem:[%s1 + $0x8] sm:$0xff]
    %v24 = vld [vmem:[%s2] sm:$0x1]
    %v26 = vperm.slane %v24, 0
    %vm28 = vcmask 130048
    %v30 = vsel %vm28, %v21, 0
    %32 = vmatpush.msra.mxu0 0.0
    %33 = vmatpush.msra.mxu0 0.0
    %34 = vmatpush.msra.mxu0 0.0
    %35 = vmatpush.msra.mxu0 0.0
    %36 = vmatpush.msra.mxu0 0.0
    %37 = vmatpush.msra.mxu0 0.0
    %38 = vmatpush.msra.mxu0 0.0
    %39 = vmatpush.msra.mxu0 0.0
    %40 = vmatpush.msra.mxu0 0.0
    %41 = vmatpush.msra.mxu0 0.0
    %42 = vmatpush.msra.mxu0 0.0
    %43 = vmatpush.msra.mxu0 0.0
    %44 = vmatpush.msra.mxu0 0.0
    %45 = vmatpush.msra.mxu0 0.0
    %46 = vmatpush.msra.mxu0 %v23
    %47 = vmatpush.msra.mxu0 %v22
    %48 = vmatmul.f32.gmra.mxu0 %v30
    %v49 = vpop.f32.mrf.mxu0
    %v50 = vadd.f32 %v26, %v49
    %51 = vdwg.mxu0
    %v52 = vmax.f32 %v50, 0.0
    %v53 = vld [vmem:[%s3] sm:$0xff]
    %v54 = vld [vmem:[%s3 + $0x8] sm:$0xff]
    %v55 = vld [vmem:[%s3 + $0x10] sm:$0xff]
    %v56 = vld [vmem:[%s3 + $0x18] sm:$0xff]
    %v57 = vld [vmem:[%s3 + $0x20] sm:$0xff]
    %v58 = vld [vmem:[%s3 + $0x28] sm:$0xff]
    %v59 = vld [vmem:[%s3 + $0x30] sm:$0xff]
    %v60 = vld [vmem:[%s3 + $0x38] sm:$0xff]
    %v61 = vld [vmem:[%s3 + $0x40] sm:$0xff]
    %v62 = vld [vmem:[%s3 + $0x48] sm:$0xff]
    %v63 = vld [vmem:[%s3 + $0x50] sm:$0xff]
    %v64 = vld [vmem:[%s3 + $0x58] sm:$0xff]
    %v65 = vld [vmem:[%s3 + $0x60] sm:$0xff]
    %v66 = vld [vmem:[%s3 + $0x68] sm:$0xff]
    %v67 = vld [vmem:[%s3 + $0x70] sm:$0xff]
    %v68 = vld [vmem:[%s3 + $0x78] sm:$0xff]
    %v69 = vld [vmem:[%s4] sm:$0x1]
    %v71 = vperm.slane %v69, 0
    %73 = vmatpush.msra.mxu0 %v68
    %74 = vmatpush.msra.mxu0 %v67
    %75 = vmatpush.msra.mxu0 %v66
    %76 = vmatpush.msra.mxu0 %v65
    %77 = vmatpush.msra.mxu0 %v64
    %78 = vmatpush.msra.mxu0 %v63
    %79 = vmatpush.msra.mxu0 %v62
    %80 = vmatpush.msra.mxu0 %v61
    %81 = vmatpush.msra.mxu0 %v60
    %82 = vmatpush.msra.mxu0 %v59
    %83 = vmatpush.msra.mxu0 %v58
    %84 = vmatpush.msra.mxu0 %v57
    %85 = vmatpush.msra.mxu0 %v56
    %86 = vmatpush.msra.mxu0 %v55
    %87 = vmatpush.msra.mxu0 %v54
    %88 = vmatpush.msra.mxu0 %v53
    %89 = vmatmul.f32.gmra.mxu0 %v52
    %v90 = vpop.f32.mrf.mxu0
    %v91 = vadd.f32 %v71, %v90
    %92 = vdwg.mxu0
    %v93 = vxor.u32 %v91, 2147483648
    %v94 = vmul.f32 %v93, 1.442695
    %v95 = vpow.pop %v94
    %v96 = vadd.f32 %v95, 1.0
    %v97 = vrcp.pop %v96
    %v98 = vmul.f32 %v96, %v97
    %v99 = vsub.f32 1.0, %v98
    %v100 = vmul.f32 %v97, %v99
    %v101 = vadd.f32 %v97, %v100
    %vm102 = vweird.f32 %v96
    %vm103 = vweird.f32 %v97
    %vm104 = vmor %vm102, %vm103
    %v105 = vsel %vm104, %v97, %v101
    %v106 = vand.u32 2147483647, %v96
    %vm107 = vcmp.eq.f32.partialorder %v106, 8.507059e+37
    %v108 = vand.u32 %v96, 2147483648
    %v109 = vor.u32 1.1754944e-38, %v108
    %v110 = vsel %vm107, %v109, %v105
    %v111 = vmul.f32 1.0, %v110
    %v112 = vmul.f32 %v111, 4.0
    %v113 = vadd.f32 %v112, 1.0
    %114 = vst [vmem:[#allocation2] sm:$0xff] %v113
    // Predicated region
    $region22: #{simple_nn_forward.1} parent=1 // pred_check
      _
    $region23: #{simple_nn_forward.1} parent=1 // pred_check_branch
      %116 = sbr.rel (0) target = $region25
    $region24: #{simple_nn_forward.1} parent=1 // pred_region
      %118 = vsyncadd [#allocation3], 0
      %s120 = sshll.u32 [#allocation2], 4
      %s121 = int_to_ptr.vmem [resolvable:$true] %s120
      %s122 = sshll.u32 %s5, 4
      %s123 = int_to_ptr.hbm [resolvable:$true] %s122
      %125 = dma.vmem_to_hbm [thread:$0]  %s121, 128, %s123, [#allocation3]
    $region25: #{simple_nn_forward.1} parent=1 // pred_fallthru
      _
    // Predicated region
    $region26: #{simple_nn_forward.1} parent=1 // pred_check
      _
    $region27: #{simple_nn_forward.1} parent=1 // pred_check_branch
      %127 = sbr.rel (0) target = $region29
    $region28: #{simple_nn_forward.1} parent=1 // pred_region
      %129 = dma.done [#allocation3], 128
    $region29: #{simple_nn_forward.1} parent=1 // pred_fallthru
      _
    %130 = vsyncpa [#allocation3], 1

</llo_original>
